<compile_context>
chip_gen: v7x
topology: tpu7x:2x2x1
jax: 0.10.0
libtpu: 0.0.40
codegen_flags: <defaults>
</compile_context>

<pallas_src>
import functools
from dataclasses import dataclass

import jax
import jax.numpy as jnp
from jax.experimental import pallas as pl
from jax.experimental.pallas import tpu as pltpu

_BF16_MIN_BATCH = 1024  # only cast MXU operands to bf16 when clearly HBM-bound


# ----------------------------------------------------------------------------
# Fused multi-head MLP kernel:
#   h = relu(x @ W1_cat + b1_cat)            (one matmul for all heads)
#   y = h @ W2_blockdiag + b2_cat            (128-lane-dense output slab)
#   per-head log-softmax over masked lane segments:
#     shared per-row max over the union of softmax lanes (log-softmax is
#     invariant to the per-row constant, so this is exact), per-segment
#     exp-sums via ONE MXU matmul against the segment-coupling matrix P.
# ----------------------------------------------------------------------------
def _fused_heads_kernel(x_ref, w1_ref, b1_ref, w2_ref, b2_ref, p_ref, m_ref,
                        o_ref, *, has_softmax):
    w2 = w2_ref[...]
    h = jnp.dot(x_ref[...], w1_ref[...], preferred_element_type=jnp.float32) + b1_ref[...]
    h = jnp.maximum(h, 0.0).astype(w2.dtype)  # bf16 cast only in the bf16 path
    y = jnp.dot(h, w2, preferred_element_type=jnp.float32) + b2_ref[...]
    if has_softmax:
        sm = m_ref[...] > 0.5                                   # (1, d_pad) mask
        neg = jnp.where(sm, y, -jnp.inf)
        mx = jnp.max(neg, axis=-1, keepdims=True)               # shared union max
        e = jnp.where(sm, jnp.exp(y - mx), 0.0)
        # P[j, i] = 1 iff lanes j, i belong to the same softmax segment, so one
        # MXU pass gives every softmax lane its segment's sum of exponentials.
        denom = jnp.dot(e, p_ref[...], preferred_element_type=jnp.float32)
        y = jnp.where(sm, y - mx - jnp.log(denom), y)
    o_ref[...] = y.astype(o_ref.dtype)


def _fused_heads_forward(x, w1, b1, w2, b2, p, mask, *, has_softmax):
    """x: (B, Din). Returns a (Bp, d_pad) output slab (padded rows included)."""
    B, din = x.shape
    h_tot = w1.shape[1]
    d_pad = w2.shape[1]

    bp = ((B + 7) // 8) * 8
    if bp <= 64:
        tm = bp                                   # single whole-batch step
    elif bp <= 1024:
        tm = ((bp // 2 + 7) // 8) * 8             # 2 parallel steps (v7x megacore)
        bp = 2 * tm
    else:
        tm = 512                                  # large-B: big tiles amortise
        bp = ((bp + tm - 1) // tm) * tm           # per-step overhead (~85% roofline)
    if bp != B:
        x = jnp.pad(x, ((0, bp - B), (0, 0)))

    out = pl.pallas_call(
        functools.partial(_fused_heads_kernel, has_softmax=has_softmax),
        out_shape=jax.ShapeDtypeStruct((bp, d_pad), jnp.float32),
        grid=(bp // tm,),
        in_specs=[
            pl.BlockSpec((tm, din), lambda i: (i, 0)),
            pl.BlockSpec((din, h_tot), lambda i: (0, 0)),
            pl.BlockSpec((1, h_tot), lambda i: (0, 0)),
            pl.BlockSpec((h_tot, d_pad), lambda i: (0, 0)),
            pl.BlockSpec((1, d_pad), lambda i: (0, 0)),
            pl.BlockSpec((d_pad, d_pad), lambda i: (0, 0)),
            pl.BlockSpec((1, d_pad), lambda i: (0, 0)),
        ],
        out_specs=pl.BlockSpec((tm, d_pad), lambda i: (i, 0)),
        compiler_params=pltpu.CompilerParams(dimension_semantics=("parallel",)),
    )(x, w1, b1, w2, b2, p, mask)
    return out


class FusedHeadBank:
    """Several 2-layer MLP heads sharing one input, fused into a single kernel.

    heads: list of (w1 (Din,H), b1 (H,), w2 (H,Dout), b2 (Dout,)) — PyTorch
    nn.Linear weights stored transposed (in, out).
    """

    def __init__(self, heads, softmax_flags):
        din = heads[0][0].shape[0]
        w1_cat = jnp.concatenate([h[0] for h in heads], axis=1)   # (Din, Htot)
        b1_cat = jnp.concatenate([h[1] for h in heads], axis=0)   # (Htot,)
        h_sizes = [h[0].shape[1] for h in heads]
        d_sizes = [h[2].shape[1] for h in heads]
        h_tot = int(sum(h_sizes))
        d_tot = int(sum(d_sizes))
        d_pad = max(128, ((d_tot + 127) // 128) * 128)

        w2_blk = jnp.zeros((h_tot, d_pad), jnp.float32)
        b2_cat = jnp.zeros((d_pad,), jnp.float32)
        seg_p = jnp.zeros((d_pad, d_pad), jnp.float32)   # segment-coupling matrix
        seg_m = jnp.zeros((1, d_pad), jnp.float32)       # union softmax-lane mask
        h_off = 0
        d_off = 0
        offsets = []
        n_softmax = 0
        for (hw1, hb1, hw2, hb2), hs, ds, sm in zip(heads, h_sizes, d_sizes, softmax_flags):
            w2_blk = w2_blk.at[h_off:h_off + hs, d_off:d_off + ds].set(hw2)
            b2_cat = b2_cat.at[d_off:d_off + ds].set(hb2)
            offsets.append((d_off, ds))
            if sm:
                seg_p = seg_p.at[d_off:d_off + ds, d_off:d_off + ds].set(1.0)
                seg_m = seg_m.at[:, d_off:d_off + ds].set(1.0)
                n_softmax += 1
            h_off += hs
            d_off += ds

        self.din = din
        self.w1 = w1_cat
        self.b1 = b1_cat.reshape(1, h_tot)
        self.w2 = w2_blk
        self.b2 = b2_cat.reshape(1, d_pad)
        self.w1_bf16 = w1_cat.astype(jnp.bfloat16)
        self.w2_bf16 = w2_blk.astype(jnp.bfloat16)
        self.seg_p = seg_p
        self.seg_m = seg_m
        self.offsets = offsets
        self.has_softmax = n_softmax > 0

    def __call__(self, x, split=True):
        B = x.shape[0]
        if B >= _BF16_MIN_BATCH:
            # Memory-bound regime: bf16 MXU operands halve HBM traffic; all
            # post-matmul / softmax math stays in f32 (v5e-safe).
            x = x.astype(jnp.bfloat16)
            w1, w2 = self.w1_bf16, self.w2_bf16
        else:
            w1, w2 = self.w1, self.w2
        slab = _fused_heads_forward(x, w1, self.b1, w2, self.b2,
                                    self.seg_p, self.seg_m,
                                    has_softmax=self.has_softmax)
        if not split:
            # Cheapest interface: one lane-dense slab + offsets; lets the loss
            # index the slab directly instead of materialising narrow slices.
            return slab[:B], list(self.offsets)
        # Per-head tensors (module semantics); each narrow slice is a small
        # extra dispatch — use split=False when the consumer can take the slab.
        return [slab[:B, off:off + d] for (off, d) in self.offsets]


# ----------------------------------------------------------------------------
# Fused BiLSTM + classification-head kernel ('multi' task, single launch)
#   Torch gate order i,f,g,o; both directions run in one (B, 2H) state with a
#   gate-major / direction-minor 8H gate layout; h_n of both directions is
#   averaged, then Linear -> ReLU -> Linear -> LogSoftmax, all in-kernel.
# ----------------------------------------------------------------------------
def _pack_lstm_dir(w_ih, w_hh, b_ih, b_hh, hidden, direction):
    """Repack one direction's PyTorch LSTM weights into the fused gate layout.

    Gate columns (8H wide), gate-major / direction-minor:
        [ i_f | i_b | f_f | f_b | g_f | g_b | o_f | o_b ]
    Returns (wih_pad (E, 8H), whh_rows (H, 8H), b_pad (8H,)).
    """
    H = hidden
    E = w_ih.shape[1]
    wih_pad = jnp.zeros((E, 8 * H), jnp.float32)
    whh_rows = jnp.zeros((H, 8 * H), jnp.float32)
    b_pad = jnp.zeros((8 * H,), jnp.float32)
    for g in range(4):                       # PyTorch order: i, f, g, o
        col = (2 * g + direction) * H
        wih_pad = wih_pad.at[:, col:col + H].set(w_ih[g * H:(g + 1) * H, :].T)
        whh_rows = whh_rows.at[:, col:col + H].set(w_hh[g * H:(g + 1) * H, :].T)
        b_pad = b_pad.at[col:col + H].set(b_ih[g * H:(g + 1) * H] + b_hh[g * H:(g + 1) * H])
    return wih_pad, whh_rows, b_pad


def _bilstm_head_kernel(x_ref, wih_f_ref, wih_b_ref, whh_ref, b_ref,
                        hw1_ref, hb1_ref, hw2_ref, hb2_ref, o_ref,
                        *, seq_len, hidden, n_class):
    T = seq_len
    H = hidden
    tb = x_ref.shape[1]
    E = x_ref.shape[2]

    # --- hoist ALL input->hidden projections out of the serial recurrence ---
    # One (T*tb, E) x (E, 8H) matmul per direction; columns are pre-placed in
    # the gate-major/direction-minor layout so the two results simply add.
    x_flat = x_ref[...].reshape(T * tb, E)
    gx_f = jnp.dot(x_flat, wih_f_ref[...],
                   preferred_element_type=jnp.float32).reshape(T, tb, 8 * H)
    gx_b = jnp.dot(x_flat, wih_b_ref[...],
                   preferred_element_type=jnp.float32).reshape(T, tb, 8 * H)
    b = b_ref[...]
    whh = whh_ref[...]

    # --- serial recurrence: ONE block-diagonal (tb,2H)x(2H,8H) matmul/step ---
    h_cat = jnp.zeros((tb, 2 * H), jnp.float32)   # [h_fwd | h_bwd]
    c_cat = jnp.zeros((tb, 2 * H), jnp.float32)
    for t in range(T):  # statically unrolled; seq_len is small & known
        gates = (gx_f[t] + gx_b[T - 1 - t] + b
                 + jnp.dot(h_cat, whh, preferred_element_type=jnp.float32))
        i = jax.nn.sigmoid(gates[:, 0 * H:2 * H])
        f = jax.nn.sigmoid(gates[:, 2 * H:4 * H])
        g = jnp.tanh(gates[:, 4 * H:6 * H])
        o = jax.nn.sigmoid(gates[:, 6 * H:8 * H])
        c_cat = f * c_cat + i * g
        h_cat = o * jnp.tanh(c_cat)

    last = (h_cat[:, 0:H] + h_cat[:, H:2 * H]) * 0.5   # torch.mean over directions

    hdd = jnp.maximum(
        jnp.dot(last, hw1_ref[...], preferred_element_type=jnp.float32) + hb1_ref[...], 0.0)
    y = jnp.dot(hdd, hw2_ref[...], preferred_element_type=jnp.float32) + hb2_ref[...]

    col = jax.lax.broadcasted_iota(jnp.int32, y.shape, 1)
    mask = col < n_class
    masked = jnp.where(mask, y, -jnp.inf)
    mx = jnp.max(masked, axis=-1, keepdims=True)
    e = jnp.where(mask, jnp.exp(y - mx), 0.0)
    lse = jnp.log(jnp.sum(e, axis=-1, keepdims=True))
    o_ref[...] = jnp.where(mask, y - mx - lse, y).astype(o_ref.dtype)


def _bilstm_head_forward(x_tbe, lstm_params, head_params, *, n_class):
    """x_tbe: (T, B, E) time-major embeddings."""
    T, B, E = x_tbe.shape
    bp = ((B + 7) // 8) * 8
    if bp <= 8:
        tb = bp
    else:
        # >=2 grid steps so v7x's two TensorCores can split the batch
        # (dimension_semantics below marks the axis parallel).
        tb = ((bp // 2 + 7) // 8) * 8
        bp = 2 * tb
    if bp != B:
        x_tbe = jnp.pad(x_tbe, ((0, 0), (0, bp - B), (0, 0)))

    wih_f, wih_b, whh_blk, b_cat = lstm_params
    hw1, hb1, hw2, hb2 = head_params
    H = hw1.shape[0]
    g8 = whh_blk.shape[1]
    d_pad = hw2.shape[1]

    out = pl.pallas_call(
        functools.partial(_bilstm_head_kernel, seq_len=T, hidden=H, n_class=n_class),
        out_shape=jax.ShapeDtypeStruct((bp, d_pad), jnp.float32),
        grid=(bp // tb,),
        in_specs=[
            pl.BlockSpec((T, tb, E), lambda i: (0, i, 0)),
            pl.BlockSpec((E, g8), lambda i: (0, 0)),
            pl.BlockSpec((E, g8), lambda i: (0, 0)),
            pl.BlockSpec((2 * H, g8), lambda i: (0, 0)),
            pl.BlockSpec((1, g8), lambda i: (0, 0)),
            pl.BlockSpec((H, H), lambda i: (0, 0)),
            pl.BlockSpec((1, H), lambda i: (0, 0)),
            pl.BlockSpec((H, d_pad), lambda i: (0, 0)),
            pl.BlockSpec((1, d_pad), lambda i: (0, 0)),
        ],
        out_specs=pl.BlockSpec((tb, d_pad), lambda i: (i, 0)),
        compiler_params=pltpu.CompilerParams(dimension_semantics=("parallel",)),
    )(x_tbe, wih_f, wih_b, whh_blk, b_cat, hw1, hb1, hw2, hb2)
    return out[:B, :n_class]


# ----------------------------------------------------------------------------
# Parameter init (deterministic, PyTorch-Linear-style uniform)
# ----------------------------------------------------------------------------
def init_linear(key, din, dout):
    k1, k2 = jax.random.split(key)
    bound = 1.0 / float(din) ** 0.5
    w = jax.random.uniform(k1, (din, dout), jnp.float32, -bound, bound)
    b = jax.random.uniform(k2, (dout,), jnp.float32, -bound, bound)
    return w, b


def init_head(key, din, hidden, dout):
    k1, k2 = jax.random.split(key)
    w1, b1 = init_linear(k1, din, hidden)
    w2, b2 = init_linear(k2, hidden, dout)
    return (w1, b1, w2, b2)


def init_lstm_dir(key, input_size, hidden_size):
    k1, k2, k3, k4 = jax.random.split(key, 4)
    bound = 1.0 / float(hidden_size) ** 0.5
    w_ih = jax.random.uniform(k1, (4 * hidden_size, input_size), jnp.float32, -bound, bound)
    w_hh = jax.random.uniform(k2, (4 * hidden_size, hidden_size), jnp.float32, -bound, bound)
    b_ih = jax.random.uniform(k3, (4 * hidden_size,), jnp.float32, -bound, bound)
    b_hh = jax.random.uniform(k4, (4 * hidden_size,), jnp.float32, -bound, bound)
    return (w_ih, w_hh, b_ih, b_hh)


# ----------------------------------------------------------------------------
# Phase0
# ----------------------------------------------------------------------------
@dataclass
class NumBedConfig:
    out_emb_size: int = 32
    hidden_size: int = 32
    decoding_exp_class: int = 10
    addition_exp_class: int = 10
    listmax_class: int = 8
    format_frac_digit_class: int = 4
    format_in01_class: int = 2
    format_in0100_class: int = 2
    aligned: bool = False
    align_with_orig: bool = False


class Phase0Pallas:
    def __init__(self, config: NumBedConfig, key):
        self.cfg = config
        E, H = config.out_emb_size, config.hidden_size
        keys = jax.random.split(key, 20)

        decoding_sig = init_head(keys[0], E, H, 1)
        decoding_exp = init_head(keys[1], E, H, config.decoding_exp_class)
        decoding_log = init_head(keys[2], E, H, 1)
        addition_sig = init_head(keys[3], 2 * E, 2 * H, 1)
        addition_exp = init_head(keys[4], 2 * E, 2 * H, config.addition_exp_class)
        addition_log = init_head(keys[5], 2 * E, 2 * H, 1)
        subtraction_sig = init_head(keys[6], 2 * E, 2 * H, 1)
        subtraction_exp = init_head(keys[7], 2 * E, 2 * H, config.addition_exp_class)
        subtraction_log = init_head(keys[8], 2 * E, 2 * H, 1)
        lstm_fwd = init_lstm_dir(keys[9], E, H)
        lstm_bwd = init_lstm_dir(keys[10], E, H)
        listmax_pred_max_id = init_head(keys[11], H, H, config.listmax_class)
        format_frac_digit = init_head(keys[12], E, H, config.format_frac_digit_class)
        format_in01 = init_head(keys[13], E, H, config.format_in01_class)
        format_in0100 = init_head(keys[14], E, H, config.format_in0100_class)
        format_pred_cp = init_head(keys[15], 2 * E, 2 * H, 1)
        format_pred_cs = init_head(keys[16], 2 * E, 2 * H, 1)

        # ---- fused head banks (built once) -------------------------------
        self.single_bank = FusedHeadBank(
            [decoding_sig, decoding_exp, decoding_log,
             format_frac_digit, format_in01, format_in0100],
            softmax_flags=[False, True, False, True, True, True])

        self.double_bank = FusedHeadBank(
            [addition_sig, addition_exp, addition_log,
             subtraction_sig, subtraction_exp, subtraction_log,
             format_pred_cp, format_pred_cs],
            softmax_flags=[False, True, False, False, True, False, False, False])

        # ---- fused BiLSTM+head params (gate-major / direction-minor) ------
        wih_f_pad, whh_f_rows, b_f_pad = _pack_lstm_dir(*lstm_fwd, hidden=H, direction=0)
        wih_b_pad, whh_b_rows, b_b_pad = _pack_lstm_dir(*lstm_bwd, hidden=H, direction=1)
        whh_blk = jnp.concatenate([whh_f_rows, whh_b_rows], axis=0)   # (2H, 8H) block-diag
        b_cat = (b_f_pad + b_b_pad).reshape(1, 8 * H)                 # disjoint columns
        self.lstm_kernel_params = (wih_f_pad, wih_b_pad, whh_blk, b_cat)

        hw1, hb1, hw2, hb2 = listmax_pred_max_id
        C = config.listmax_class
        hw2_p = jnp.zeros((H, 128), jnp.float32).at[:, :C].set(hw2)
        hb2_p = jnp.zeros((128,), jnp.float32).at[:C].set(hb2)
        self.multi_head_params = (hw1, hb1.reshape(1, H), hw2_p, hb2_p.reshape(1, 128))

    # TODO(synk): NumBed core model definition is not provided; treated as
    #             identity on a precomputed (B, out_emb_size) embedding.
    def core_model(self, inputs):
        return inputs["emb"]

    def __call__(self, task, input_dicts):
        if task == "single":
            emb = self.core_model(input_dicts[0])
            feats = None
            (decoding_sig, decoding_exp, decoding_log,
             format_frac, format_in01, format_in0100) = self.single_bank(emb)
            return (decoding_sig, decoding_exp, decoding_log,
                    format_frac, format_in01, format_in0100, feats)

        if task == "double":
            embs = [self.core_model(inputs) for inputs in input_dicts]
            feats = None
            emb = jnp.concatenate(embs, axis=1)
            (addition_sig, addition_exp, addition_log,
             subtraction_sig, subtraction_exp, subtraction_log,
             cp_pred, cs_pred) = self.double_bank(emb)
            return (addition_sig, addition_exp, addition_log,
                    subtraction_sig, subtraction_exp, subtraction_log,
                    cp_pred, cs_pred, feats)

        if task == "multi":
            embs = [self.core_model(inputs) for inputs in input_dicts]
            feats = None
            # torch.stack(embs) is already time-major (T, B, E), which is the
            # layout the fused kernel consumes; no transpose round-trip.
            emb_tbe = jnp.stack(embs, axis=0)
            max_id_pred = _bilstm_head_forward(
                emb_tbe, self.lstm_kernel_params, self.multi_head_params,
                n_class=self.cfg.listmax_class)
            # torch .squeeze(0) is a no-op unless batch == 1
            if max_id_pred.shape[0] == 1:
                max_id_pred = max_id_pred[0]
            return (max_id_pred, feats)

        raise ValueError(f"unknown task {task}")


# ----------------------------------------------------------------------------
if __name__ == "__main__":
    cfg = NumBedConfig()
    key = jax.random.PRNGKey(0)
    k_model, k_x1, k_x2, k_multi = jax.random.split(key, 4)

    model = Phase0Pallas(cfg, k_model)

    B, E = 2, cfg.out_emb_size
    x1 = jax.random.normal(k_x1, (B, E), jnp.float32)
    x2 = jax.random.normal(k_x2, (B, E), jnp.float32)
    multi_keys = jax.random.split(k_multi, 5)
    multi_inputs = [{"emb": jax.random.normal(kk, (B, E), jnp.float32)} for kk in multi_keys]

    out_single = model("single", [{"emb": x1}])
    out_double = model("double", [{"emb": x1}, {"emb": x2}])
    out_multi = model("multi", multi_inputs)

    for o in out_single[:-1]:
        jax.block_until_ready(o)
    for o in out_double[:-1]:
        jax.block_until_ready(o)
    jax.block_until_ready(out_multi[0])

    print("KERNEL_OK")
</pallas_src>

<mosaic_0001>
module attributes {stable_mosaic.version = 11 : i64} {
  func.func @_fused_heads_kernel(%arg0: i32, %arg1: memref<8x32xf32, #tpu.memory_space<vmem>>, %arg2: memref<32x192xf32, #tpu.memory_space<vmem>>, %arg3: memref<1x192xf32, #tpu.memory_space<vmem>>, %arg4: memref<192x128xf32, #tpu.memory_space<vmem>>, %arg5: memref<1x128xf32, #tpu.memory_space<vmem>>, %arg6: memref<128x128xf32, #tpu.memory_space<vmem>>, %arg7: memref<1x128xf32, #tpu.memory_space<vmem>>, %arg8: memref<8x128xf32, #tpu.memory_space<vmem>>) attributes {dimension_semantics = [#tpu.dimension_semantics<parallel>], iteration_bounds = array<i64: 1>, scalar_prefetch = 0 : i64, scratch_operands = 0 : i64, tpu.core_type = #tpu.core_type<tc>, window_params = [{transform_indices = @transform_0, window_bounds = array<i64: 8, 32>}, {pipeline_mode = #tpu.pipeline_mode<synchronous>, transform_indices = @transform_1, window_bounds = array<i64: 32, 192>}, {pipeline_mode = #tpu.pipeline_mode<synchronous>, transform_indices = @transform_2, window_bounds = array<i64: 1, 192>}, {pipeline_mode = #tpu.pipeline_mode<synchronous>, transform_indices = @transform_3, window_bounds = array<i64: 192, 128>}, {pipeline_mode = #tpu.pipeline_mode<synchronous>, transform_indices = @transform_4, window_bounds = array<i64: 1, 128>}, {pipeline_mode = #tpu.pipeline_mode<synchronous>, transform_indices = @transform_5, window_bounds = array<i64: 128, 128>}, {pipeline_mode = #tpu.pipeline_mode<synchronous>, transform_indices = @transform_6, window_bounds = array<i64: 1, 128>}, {transform_indices = @transform_7, window_bounds = array<i64: 8, 128>}]} {
    %c0 = arith.constant 0 : index
    %c0_0 = arith.constant 0 : index
    %0 = vector.load %arg4[%c0, %c0_0] : memref<192x128xf32, #tpu.memory_space<vmem>>, vector<192x128xf32>
    %c0_1 = arith.constant 0 : index
    %c0_2 = arith.constant 0 : index
    %1 = vector.load %arg1[%c0_1, %c0_2] : memref<8x32xf32, #tpu.memory_space<vmem>>, vector<8x32xf32>
    %c0_3 = arith.constant 0 : index
    %c0_4 = arith.constant 0 : index
    %2 = vector.load %arg2[%c0_3, %c0_4] : memref<32x192xf32, #tpu.memory_space<vmem>>, vector<32x192xf32>
    %cst = arith.constant dense<0.000000e+00> : vector<8x192xf32>
    %3 = tpu.matmul %1, %2, %cst {dimension_numbers = #tpu.dot_dimension_numbers<[1], [0], [0], [1], [0, 0, 1, 1], [], []>} : vector<8x32xf32>, vector<32x192xf32>, vector<8x192xf32> -> vector<8x192xf32>
    %c0_5 = arith.constant 0 : index
    %c0_6 = arith.constant 0 : index
    %4 = vector.load %arg3[%c0_5, %c0_6] : memref<1x192xf32, #tpu.memory_space<vmem>>, vector<1x192xf32>
    %5 = vector.broadcast %4 : vector<1x192xf32> to vector<8x192xf32>
    %6 = arith.addf %3, %5 : vector<8x192xf32>
    %cst_7 = arith.constant 0.000000e+00 : f32
    %7 = vector.broadcast %cst_7 : f32 to vector<8x192xf32>
    %8 = arith.maximumf %6, %7 : vector<8x192xf32>
    %cst_8 = arith.constant dense<0.000000e+00> : vector<8x128xf32>
    %9 = tpu.matmul %8, %0, %cst_8 {dimension_numbers = #tpu.dot_dimension_numbers<[1], [0], [0], [1], [0, 0, 1, 1], [], []>} : vector<8x192xf32>, vector<192x128xf32>, vector<8x128xf32> -> vector<8x128xf32>
    %c0_9 = arith.constant 0 : index
    %c0_10 = arith.constant 0 : index
    %10 = vector.load %arg5[%c0_9, %c0_10] : memref<1x128xf32, #tpu.memory_space<vmem>>, vector<1x128xf32>
    %11 = vector.broadcast %10 : vector<1x128xf32> to vector<8x128xf32>
    %12 = arith.addf %9, %11 : vector<8x128xf32>
    %c0_11 = arith.constant 0 : index
    %c0_12 = arith.constant 0 : index
    %13 = vector.load %arg7[%c0_11, %c0_12] : memref<1x128xf32, #tpu.memory_space<vmem>>, vector<1x128xf32>
    %cst_13 = arith.constant 5.000000e-01 : f32
    %14 = vector.broadcast %cst_13 : f32 to vector<1x128xf32>
    %15 = arith.cmpf ogt, %13, %14 : vector<1x128xf32>
    %cst_14 = arith.constant 0xFF800000 : f32
    %16 = vector.shape_cast %15 : vector<1x128xi1> to vector<1x128xi1>
    %17 = vector.broadcast %16 : vector<1x128xi1> to vector<8x128xi1>
    %18 = vector.broadcast %cst_14 : f32 to vector<8x128xf32>
    %19 = arith.select %17, %12, %18 : vector<8x128xi1>, vector<8x128xf32>
    %cst_15 = arith.constant dense<0xFF800000> : vector<8xf32>
    %20 = vector.multi_reduction <maximumf>, %19, %cst_15 [1] : vector<8x128xf32> to vector<8xf32>
    %21 = vector.shape_cast %20 : vector<8xf32> to vector<8x1xf32>
    %22 = vector.broadcast %21 : vector<8x1xf32> to vector<8x128xf32>
    %23 = arith.subf %12, %22 : vector<8x128xf32>
    %24 = math.exp %23 : vector<8x128xf32>
    %cst_16 = arith.constant 0.000000e+00 : f32
    %25 = vector.shape_cast %15 : vector<1x128xi1> to vector<1x128xi1>
    %26 = vector.broadcast %25 : vector<1x128xi1> to vector<8x128xi1>
    %27 = vector.broadcast %cst_16 : f32 to vector<8x128xf32>
    %28 = arith.select %26, %24, %27 : vector<8x128xi1>, vector<8x128xf32>
    %c0_17 = arith.constant 0 : index
    %c0_18 = arith.constant 0 : index
    %29 = vector.load %arg6[%c0_17, %c0_18] : memref<128x128xf32, #tpu.memory_space<vmem>>, vector<128x128xf32>
    %cst_19 = arith.constant dense<0.000000e+00> : vector<8x128xf32>
    %30 = tpu.matmul %28, %29, %cst_19 {dimension_numbers = #tpu.dot_dimension_numbers<[1], [0], [0], [1], [0, 0, 1, 1], [], []>} : vector<8x128xf32>, vector<128x128xf32>, vector<8x128xf32> -> vector<8x128xf32>
    %31 = vector.broadcast %21 : vector<8x1xf32> to vector<8x128xf32>
    %32 = arith.subf %12, %31 : vector<8x128xf32>
    %33 = math.log %30 : vector<8x128xf32>
    %34 = arith.subf %32, %33 : vector<8x128xf32>
    %35 = vector.shape_cast %15 : vector<1x128xi1> to vector<1x128xi1>
    %36 = vector.broadcast %35 : vector<1x128xi1> to vector<8x128xi1>
    %37 = arith.select %36, %34, %12 : vector<8x128xi1>, vector<8x128xf32>
    %c0_20 = arith.constant 0 : index
    %c0_21 = arith.constant 0 : index
    %38 = vector.load %arg8[%c0_20, %c0_21] : memref<8x128xf32, #tpu.memory_space<vmem>>, vector<8x128xf32>
    tpu.vector_store %arg8[%c0_20, %c0_21], %37 {strides = array<i32>} : memref<8x128xf32, #tpu.memory_space<vmem>>, vector<8x128xf32>,
    return
  }
  func.func @transform_0(%arg0: i32) -> (i32, i32) {
    %c0_i32 = arith.constant 0 : i32
    %c0_i32_0 = arith.constant 0 : i32
    return %arg0, %c0_i32 : i32, i32
  }
  func.func @transform_1(%arg0: i32) -> (i32, i32) {
    %c0_i32 = arith.constant 0 : i32
    %c0_i32_0 = arith.constant 0 : i32
    %c0_i32_1 = arith.constant 0 : i32
    return %c0_i32, %c0_i32_0 : i32, i32
  }
  func.func @transform_2(%arg0: i32) -> (i32, i32) {
    %c0_i32 = arith.constant 0 : i32
    %c0_i32_0 = arith.constant 0 : i32
    %c0_i32_1 = arith.constant 0 : i32
    return %c0_i32, %c0_i32_0 : i32, i32
  }
  func.func @transform_3(%arg0: i32) -> (i32, i32) {
    %c0_i32 = arith.constant 0 : i32
    %c0_i32_0 = arith.constant 0 : i32
    %c0_i32_1 = arith.constant 0 : i32
    return %c0_i32, %c0_i32_0 : i32, i32
  }
  func.func @transform_4(%arg0: i32) -> (i32, i32) {
    %c0_i32 = arith.constant 0 : i32
    %c0_i32_0 = arith.constant 0 : i32
    %c0_i32_1 = arith.constant 0 : i32
    return %c0_i32, %c0_i32_0 : i32, i32
  }
  func.func @transform_5(%arg0: i32) -> (i32, i32) {
    %c0_i32 = arith.constant 0 : i32
    %c0_i32_0 = arith.constant 0 : i32
    %c0_i32_1 = arith.constant 0 : i32
    return %c0_i32, %c0_i32_0 : i32, i32
  }
  func.func @transform_6(%arg0: i32) -> (i32, i32) {
    %c0_i32 = arith.constant 0 : i32
    %c0_i32_0 = arith.constant 0 : i32
    %c0_i32_1 = arith.constant 0 : i32
    return %c0_i32, %c0_i32_0 : i32, i32
  }
  func.func @transform_7(%arg0: i32) -> (i32, i32) {
    %c0_i32 = arith.constant 0 : i32
    %c0_i32_0 = arith.constant 0 : i32
    return %arg0, %c0_i32 : i32, i32
  }
}

</mosaic_0001>

<llo_original>
// kernel: tpu_custom_call.1
$region0: #{tpu_custom_call.1}
  #allocation0 [shape = 'u32[]', space=smem, size = 0x4, offset = 0x4, fixed_abs, tag = 'smem constant byte address 0x4 - core index']
  #allocation1 [shape = 'u32[144,128]{1,0:T(1,128)}', space=vmem, size = 0x12000, scoped, tag = 'internal scratch']
  %s0 = inlined_call_operand.hbm [shape: f32[8,32], index: 0, kind: input, shape index: {}]
  %s1 = inlined_call_operand.hbm [shape: f32[32,192], index: 1, kind: input, shape index: {}]
  %s2 = inlined_call_operand.vmem [shape: f32[1,192], index: 2, kind: input, shape index: {}]
  %s3 = inlined_call_operand.hbm [shape: f32[192,128], index: 3, kind: input, shape index: {}]
  %s4 = inlined_call_operand.vmem [shape: f32[1,128], index: 4, kind: input, shape index: {}]
  %s5 = inlined_call_operand.hbm [shape: f32[128,128], index: 5, kind: input, shape index: {}]
  %s6 = inlined_call_operand.vmem [shape: f32[1,128], index: 6, kind: input, shape index: {}]
  %s7 = inlined_call_operand.hbm [shape: f32[8,128], index: 7, kind: output, shape index: {}]
  %s8 = sld [smem:[#allocation0]]
  $region54: #{tpu_custom_call.1} parent=0
    _
  %s10 = ssub.s32 1, %s8
  %s11 = scalar_select 0, %s10, %s8
  $region1: #{tpu_custom_call.1} parent=0
    #allocation2 [shape = 'u8[4096]{0}', space=vmem, size = 0x1000, scoped, tag = 'input window, operand 0, single buffered']
    #allocation3 [shape = 's32[1]{0}', space=sflag, size = 0x4, scoped, tag = 'scoped memory for tpu_custom_call.1']
    #allocation4 [shape = 's32[1]{0}', space=sflag, size = 0x4, scoped, tag = 'scoped memory for tpu_custom_call.1']
    #allocation5 [shape = 'u8[32768]{0}', space=vmem, size = 0x8000, scoped, tag = 'input window, operand 1, single buffered']
    #allocation6 [shape = 's32[1]{0}', space=sflag, size = 0x4, scoped, tag = 'scoped memory for tpu_custom_call.1']
    #allocation7 [shape = 'u8[98304]{0}', space=vmem, size = 0x18000, scoped, tag = 'input window, operand 3, single buffered']
    #allocation8 [shape = 'u8[65536]{0}', space=vmem, size = 0x10000, scoped, tag = 'input window, operand 5, single buffered']
    #allocation9 [shape = 's32[1]{0}', space=sflag, size = 0x4, scoped, tag = 'scoped memory for tpu_custom_call.1']
    #allocation10 [shape = 'u8[4096]{0}', space=vmem, size = 0x1000, scoped, tag = 'output window, operand 0, single buffered']
    %12 = vsyncpa [#allocation3], 0
    %13 = vsyncpa [#allocation6], 0
    %14 = vsyncpa [#allocation9], 0
    %15 = vsyncpa [#allocation4], 0
    // Predicated region
    $region2: #{tpu_custom_call.1} parent=1 // pred_check
      _
    $region3: #{tpu_custom_call.1} parent=1 // pred_check_branch
      %17 = sbr.rel (0) target = $region5
    $region4: #{tpu_custom_call.1} parent=1 // pred_region
      %s19 = ssub.s32 128, 128
      %20 = vsyncadd [#allocation3], %s19
      %s22 = sshll.u32 [#allocation2], 4
      %s23 = int_to_ptr.vmem [resolvable:$true] %s22
      %25 = dma.hbm_to_vmem [thread:$0]  %s0, 128, %s23, [#allocation3]
    $region5: #{tpu_custom_call.1} parent=1 // pred_fallthru
      _
    // Predicated region
    $region6: #{tpu_custom_call.1} parent=1 // pred_check
      _
    $region7: #{tpu_custom_call.1} parent=1 // pred_check_branch
      %27 = sbr.rel (0) target = $region9
    $region8: #{tpu_custom_call.1} parent=1 // pred_region
      %s29 = ssub.s32 1024, 1024
      %30 = vsyncadd [#allocation6], %s29
      %s31 = sshll.u32 [#allocation5], 4
      %s32 = int_to_ptr.vmem [resolvable:$true] %s31
      %37 = dma.hbm_to_vmem [thread:$0]  %s1, 1024, %s32, [#allocation6], 256, 256, 16
    $region9: #{tpu_custom_call.1} parent=1 // pred_fallthru
      _
    // Predicated region
    $region10: #{tpu_custom_call.1} parent=1 // pred_check
      _
    $region11: #{tpu_custom_call.1} parent=1 // pred_check_branch
      %39 = sbr.rel (0) target = $region13
    $region12: #{tpu_custom_call.1} parent=1 // pred_region
      _
    $region13: #{tpu_custom_call.1} parent=1 // pred_fallthru
      _
    // Predicated region
    $region14: #{tpu_custom_call.1} parent=1 // pred_check
      _
    $region15: #{tpu_custom_call.1} parent=1 // pred_check_branch
      %41 = sbr.rel (0) target = $region17
    $region16: #{tpu_custom_call.1} parent=1 // pred_region
      %s43 = ssub.s32 3072, 3072
      %44 = vsyncadd [#allocation6], %s43
      %s45 = sshll.u32 [#allocation7], 4
      %s46 = int_to_ptr.vmem [resolvable:$true] %s45
      %51 = dma.hbm_to_vmem [thread:$0]  %s3, 3072, %s46, [#allocation6], 128, 128, 8
    $region17: #{tpu_custom_call.1} parent=1 // pred_fallthru
      _
    // Predicated region
    $region18: #{tpu_custom_call.1} parent=1 // pred_check
      _
    $region19: #{tpu_custom_call.1} parent=1 // pred_check_branch
      %53 = sbr.rel (0) target = $region21
    $region20: #{tpu_custom_call.1} parent=1 // pred_region
      _
    $region21: #{tpu_custom_call.1} parent=1 // pred_fallthru
      _
    // Predicated region
    $region22: #{tpu_custom_call.1} parent=1 // pred_check
      _
    $region23: #{tpu_custom_call.1} parent=1 // pred_check_branch
      %55 = sbr.rel (0) target = $region25
    $region24: #{tpu_custom_call.1} parent=1 // pred_region
      %s57 = ssub.s32 2048, 2048
      %58 = vsyncadd [#allocation9], %s57
      %s59 = sshll.u32 [#allocation8], 4
      %s60 = int_to_ptr.vmem [resolvable:$true] %s59
      %65 = dma.hbm_to_vmem [thread:$0]  %s5, 2048, %s60, [#allocation9], 128, 128, 8
    $region25: #{tpu_custom_call.1} parent=1 // pred_fallthru
      _
    // Predicated region
    $region26: #{tpu_custom_call.1} parent=1 // pred_check
      _
    $region27: #{tpu_custom_call.1} parent=1 // pred_check_branch
      %67 = sbr.rel (0) target = $region29
    $region28: #{tpu_custom_call.1} parent=1 // pred_region
      _
    $region29: #{tpu_custom_call.1} parent=1 // pred_fallthru
      _
    // Predicated region
    $region30: #{tpu_custom_call.1} parent=1 // pred_check
      _
    $region31: #{tpu_custom_call.1} parent=1 // pred_check_branch
      %69 = sbr.rel (0) target = $region33
    $region32: #{tpu_custom_call.1} parent=1 // pred_region
      %70 = dma.done [#allocation3], 128
    $region33: #{tpu_custom_call.1} parent=1 // pred_fallthru
      _
    // Predicated region
    $region34: #{tpu_custom_call.1} parent=1 // pred_check
      _
    $region35: #{tpu_custom_call.1} parent=1 // pred_check_branch
      %72 = sbr.rel (0) target = $region37
    $region36: #{tpu_custom_call.1} parent=1 // pred_region
      %73 = dma.done [#allocation6], 1024
    $region37: #{tpu_custom_call.1} parent=1 // pred_fallthru
      _
    // Predicated region
    $region38: #{tpu_custom_call.1} parent=1 // pred_check
      _
    $region39: #{tpu_custom_call.1} parent=1 // pred_check_branch
      %75 = sbr.rel (0) target = $region41
    $region40: #{tpu_custom_call.1} parent=1 // pred_region
      %76 = dma.done [#allocation6], 3072
    $region41: #{tpu_custom_call.1} parent=1 // pred_fallthru
      _
    // Predicated region
    $region42: #{tpu_custom_call.1} parent=1 // pred_check
      _
    $region43: #{tpu_custom_call.1} parent=1 // pred_check_branch
      %78 = sbr.rel (0) target = $region45
    $region44: #{tpu_custom_call.1} parent=1 // pred_region
      %79 = dma.done [#allocation9], 2048
    $region45: #{tpu_custom_call.1} parent=1 // pred_fallthru
      _
    %v80 = vld [vmem:[#allocation7] sm:$0xff]
    %v81 = vld [vmem:[#allocation7 + $0x8] sm:$0xff]
    %v82 = vld [vmem:[#allocation7 + $0x10] sm:$0xff]
    %v83 = vld [vmem:[#allocation7 + $0x18] sm:$0xff]
    %v84 = vld [vmem:[#allocation7 + $0x20] sm:$0xff]
    %v85 = vld [vmem:[#allocation7 + $0x28] sm:$0xff]
    %v86 = vld [vmem:[#allocation7 + $0x30] sm:$0xff]
    %v87 = vld [vmem:[#allocation7 + $0x38] sm:$0xff]
    %v88 = vld [vmem:[#allocation7 + $0x40] sm:$0xff]
    %v89 = vld [vmem:[#allocation7 + $0x48] sm:$0xff]
    %v90 = vld [vmem:[#allocation7 + $0x50] sm:$0xff]
    %v91 = vld [vmem:[#allocation7 + $0x58] sm:$0xff]
    %v92 = vld [vmem:[#allocation7 + $0x60] sm:$0xff]
    %v93 = vld [vmem:[#allocation7 + $0x68] sm:$0xff]
    %v94 = vld [vmem:[#allocation7 + $0x70] sm:$0xff]
    %v95 = vld [vmem:[#allocation7 + $0x78] sm:$0xff]
    %v96 = vld [vmem:[#allocation7 + $0x80] sm:$0xff]
    %v97 = vld [vmem:[#allocation7 + $0x88] sm:$0xff]
    %v98 = vld [vmem:[#allocation7 + $0x90] sm:$0xff]
    %v99 = vld [vmem:[#allocation7 + $0x98] sm:$0xff]
    %v100 = vld [vmem:[#allocation7 + $0xa0] sm:$0xff]
    %v101 = vld [vmem:[#allocation7 + $0xa8] sm:$0xff]
    %v102 = vld [vmem:[#allocation7 + $0xb0] sm:$0xff]
    %v103 = vld [vmem:[#allocation7 + $0xb8] sm:$0xff]
    %v104 = vld [vmem:[#allocation2] sm:$0xff]
    %v105 = vld [vmem:[#allocation5] sm:$0xff]
    %v106 = vld [vmem:[#allocation5 + $0x8] sm:$0xff]
    %v107 = vld [vmem:[#allocation5 + $0x10] sm:$0xff]
    %v108 = vld [vmem:[#allocation5 + $0x18] sm:$0xff]
    %v109 = vld [vmem:[#allocation5 + $0x20] sm:$0xff]
    %v110 = vld [vmem:[#allocation5 + $0x28] sm:$0xff]
    %v111 = vld [vmem:[#allocation5 + $0x30] sm:$0xff]
    %v112 = vld [vmem:[#allocation5 + $0x38] sm:$0xff]
    %v113 = vld [vmem:[%s2] sm:$0x3]
    %v115 = vlaneseq
    %v116 = vshrl.u32 %v115, 7
    %v117 = vsub.s32 0, %v116
    %v118 = vrot.slane %v113, %v117
    %v119 = vlaneseq
    %v120 = vshrl.u32 %v119, 7
    %v121 = vsub.s32 1, %v120
    %v122 = vrot.slane %v113, %v121
    %vm125 = vcmask 261120
    %v127 = vsel %vm125, %v104, 0
    %129 = vmatprep.subr.mxu0 %v106
    %130 = vmatpush1.msra.mxu0 %v105
    %131 = vmatprep.subr.mxu0 %v108
    %132 = vmatpush1.msra.mxu0 %v107
    %133 = vmatprep.subr.mxu0 %v110
    %134 = vmatpush1.msra.mxu0 %v109
    %135 = vmatprep.subr.mxu0 %v112
    %136 = vmatpush1.msra.mxu0 %v111
    %137 = vmatprep.subr.mxu0 0.0
    %138 = vmatpush1.msra.mxu0 0.0
    %139 = vmatprep.subr.mxu0 0.0
    %140 = vmatpush1.msra.mxu0 0.0
    %141 = vmatprep.subr.mxu0 0.0
    %142 = vmatpush1.msra.mxu0 0.0
    %143 = vmatprep.subr.mxu0 0.0
    %144 = vmatpush1.msra.mxu0 0.0
    %145 = vmatprep.subr.mxu0 0.0
    %146 = vmatpush1.msra.mxu0 0.0
    %147 = vmatprep.subr.mxu0 0.0
    %148 = vmatpush1.msra.mxu0 0.0
    %149 = vmatprep.subr.mxu0 0.0
    %150 = vmatpush1.msra.mxu0 0.0
    %151 = vmatprep.subr.mxu0 0.0
    %152 = vmatpush1.msra.mxu0 0.0
    %153 = vmatprep.subr.mxu0 0.0
    %154 = vmatpush1.msra.mxu0 0.0
    %155 = vmatprep.subr.mxu0 0.0
    %156 = vmatpush1.msra.mxu0 0.0
    %157 = vmatprep.subr.mxu0 0.0
    %158 = vmatpush1.msra.mxu0 0.0
    %159 = vmatprep.subr.mxu0 0.0
    %160 = vmatpush1.msra.mxu0 0.0
    %161 = vmatprep.subr.mxu0 0.0
    %162 = vmatpush1.msra.mxu0 0.0
    %163 = vmatprep.subr.mxu0 0.0
    %164 = vmatpush1.msra.mxu0 0.0
    %165 = vmatprep.subr.mxu0 0.0
    %166 = vmatpush1.msra.mxu0 0.0
    %167 = vmatprep.subr.mxu0 0.0
    %168 = vmatpush1.msra.mxu0 0.0
    %169 = vmatprep.subr.mxu0 0.0
    %170 = vmatpush1.msra.mxu0 0.0
    %171 = vmatprep.subr.mxu0 0.0
    %172 = vmatpush1.msra.mxu0 0.0
    %173 = vmatprep.subr.mxu0 0.0
    %174 = vmatpush1.msra.mxu0 0.0
    %175 = vmatprep.subr.mxu0 0.0
    %176 = vmatpush1.msra.mxu0 0.0
    %177 = vmatprep.subr.mxu0 0.0
    %178 = vmatpush1.msra.mxu0 0.0
    %179 = vmatprep.subr.mxu0 0.0
    %180 = vmatpush1.msra.mxu0 0.0
    %181 = vmatprep.subr.mxu0 0.0
    %182 = vmatpush1.msra.mxu0 0.0
    %183 = vmatprep.subr.mxu0 0.0
    %184 = vmatpush1.msra.mxu0 0.0
    %185 = vmatprep.subr.mxu0 0.0
    %186 = vmatpush1.msra.mxu0 0.0
    %187 = vmatprep.subr.mxu0 0.0
    %188 = vmatpush1.msra.mxu0 0.0
    %189 = vmatprep.subr.mxu0 0.0
    %190 = vmatpush1.msra.mxu0 0.0
    %191 = vmatprep.subr.mxu0 0.0
    %192 = vmatpush1.msra.mxu0 0.0
    %193 = vmatprep.mubr.f32.mxu0 0.0
    %194 = vmatmul.mubr.f32.gmra.mrb[0].mxu0 %v127
    %v195 = vpop.f32.mrb[0].mxu0
    %v196 = vadd.f32 %v118, %v195
    %v197 = vpop.f32.mrb[0].mxu0
    %v198 = vadd.f32 %v122, %v197
    %199 = vdwg.mxu0
    %v200 = vmax.f32 %v196, 0.0
    %v201 = vmax.f32 %v198, 0.0
    %v202 = vld [vmem:[%s4] sm:$0x1]
    %v204 = vlaneseq
    %v205 = vshrl.u32 %v204, 7
    %v206 = vsub.s32 0, %v205
    %v207 = vrot.slane %v202, %v206
    %vm209 = vcmask 523264
    %v211 = vsel %vm209, %v201, 0
    %213 = vmatprep.subr.mxu0 0.0
    %214 = vmatpush1.msra.mxu0 %v80
    %215 = vmatprep.subr.mxu0 0.0
    %216 = vmatpush1.msra.mxu0 %v81
    %217 = vmatprep.subr.mxu0 0.0
    %218 = vmatpush1.msra.mxu0 %v82
    %219 = vmatprep.subr.mxu0 0.0
    %220 = vmatpush1.msra.mxu0 %v83
    %221 = vmatprep.subr.mxu0 0.0
    %222 = vmatpush1.msra.mxu0 %v84
    %223 = vmatprep.subr.mxu0 0.0
    %224 = vmatpush1.msra.mxu0 %v85
    %225 = vmatprep.subr.mxu0 0.0
    %226 = vmatpush1.msra.mxu0 %v86
    %227 = vmatprep.subr.mxu0 0.0
    %228 = vmatpush1.msra.mxu0 %v87
    %229 = vmatprep.subr.mxu0 0.0
    %230 = vmatpush1.msra.mxu0 %v88
    %231 = vmatprep.subr.mxu0 0.0
    %232 = vmatpush1.msra.mxu0 %v89
    %233 = vmatprep.subr.mxu0 0.0
    %234 = vmatpush1.msra.mxu0 %v90
    %235 = vmatprep.subr.mxu0 0.0
    %236 = vmatpush1.msra.mxu0 %v91
    %237 = vmatprep.subr.mxu0 0.0
    %238 = vmatpush1.msra.mxu0 %v92
    %239 = vmatprep.subr.mxu0 0.0
    %240 = vmatpush1.msra.mxu0 %v93
    %241 = vmatprep.subr.mxu0 0.0
    %242 = vmatpush1.msra.mxu0 %v94
    %243 = vmatprep.subr.mxu0 0.0
    %244 = vmatpush1.msra.mxu0 %v95
    %245 = vmatprep.subr.mxu0 0.0
    %246 = vmatpush1.msra.mxu0 %v96
    %247 = vmatprep.subr.mxu0 0.0
    %248 = vmatpush1.msra.mxu0 %v97
    %249 = vmatprep.subr.mxu0 0.0
    %250 = vmatpush1.msra.mxu0 %v98
    %251 = vmatprep.subr.mxu0 0.0
    %252 = vmatpush1.msra.mxu0 %v99
    %253 = vmatprep.subr.mxu0 0.0
    %254 = vmatpush1.msra.mxu0 %v100
    %255 = vmatprep.subr.mxu0 0.0
    %256 = vmatpush1.msra.mxu0 %v101
    %257 = vmatprep.subr.mxu0 0.0
    %258 = vmatpush1.msra.mxu0 %v102
    %259 = vmatprep.subr.mxu0 0.0
    %260 = vmatpush1.msra.mxu0 %v103
    %261 = vmatprep.subr.mxu0 0.0
    %262 = vmatpush1.msra.mxu0 0.0
    %263 = vmatprep.subr.mxu0 0.0
    %264 = vmatpush1.msra.mxu0 0.0
    %265 = vmatprep.subr.mxu0 0.0
    %266 = vmatpush1.msra.mxu0 0.0
    %267 = vmatprep.subr.mxu0 0.0
    %268 = vmatpush1.msra.mxu0 0.0
    %269 = vmatprep.subr.mxu0 0.0
    %270 = vmatpush1.msra.mxu0 0.0
    %271 = vmatprep.subr.mxu0 0.0
    %272 = vmatpush1.msra.mxu0 0.0
    %273 = vmatprep.subr.mxu0 0.0
    %274 = vmatpush1.msra.mxu0 0.0
    %275 = vmatprep.subr.mxu0 0.0
    %276 = vmatpush1.msra.mxu0 0.0
    %277 = vmatprep.mubr.f32.mxu0 %v211
    %278 = vmatmul.mubr.f32.gmra.mrb[0].mxu0 %v200
    %v279 = vpop.f32.mrb[0].mxu0
    %v280 = vadd.f32 %v207, %v279
    %v281 = vpop.f32.mrb[0].mxu0
    %282 = vdwg.mxu0
    %v283 = vld [vmem:[%s6] sm:$0x1]
    %vm284 = vcmp.gt.f32.partialorder %v283, 0.5
    %v285 = vsel %vm284, 1, 0
    %v286 = vlaneseq
    %v287 = vshrl.u32 %v286, 7
    %v288 = vsub.s32 0, %v287
    %v289 = vrot.slane %v285, %v288
    %vm290 = vcmp.eq.s32.totalorder %v289, 1
    %v291 = vsel %vm290, %v280, -inf
    %292 = vmax.xlane.f32.xlu0 %v291
    %v293 = vpop.xlane.xlu0 %292
    %v294 = vsub.f32 %v280, %v293
    %v295 = vmul.f32 %v294, 1.442695
    %v296 = vpow.pop %v295
    %v297 = vsel %vm290, %v296, 0.0
    %v298 = vld [vmem:[#allocation8] sm:$0xff]
    %v299 = vld [vmem:[#allocation8 + $0x8] sm:$0xff]
    %v300 = vld [vmem:[#allocation8 + $0x10] sm:$0xff]
    %v301 = vld [vmem:[#allocation8 + $0x18] sm:$0xff]
    %v302 = vld [vmem:[#allocation8 + $0x20] sm:$0xff]
    %v303 = vld [vmem:[#allocation8 + $0x28] sm:$0xff]
    %v304 = vld [vmem:[#allocation8 + $0x30] sm:$0xff]
    %v305 = vld [vmem:[#allocation8 + $0x38] sm:$0xff]
    %v306 = vld [vmem:[#allocation8 + $0x40] sm:$0xff]
    %v307 = vld [vmem:[#allocation8 + $0x48] sm:$0xff]
    %v308 = vld [vmem:[#allocation8 + $0x50] sm:$0xff]
    %v309 = vld [vmem:[#allocation8 + $0x58] sm:$0xff]
    %v310 = vld [vmem:[#allocation8 + $0x60] sm:$0xff]
    %v311 = vld [vmem:[#allocation8 + $0x68] sm:$0xff]
    %v312 = vld [vmem:[#allocation8 + $0x70] sm:$0xff]
    %v313 = vld [vmem:[#allocation8 + $0x78] sm:$0xff]
    %314 = vmatprep.subr.mxu0 0.0
    %315 = vmatpush1.msra.mxu0 %v298
    %316 = vmatprep.subr.mxu0 0.0
    %317 = vmatpush1.msra.mxu0 %v299
    %318 = vmatprep.subr.mxu0 0.0
    %319 = vmatpush1.msra.mxu0 %v300
    %320 = vmatprep.subr.mxu0 0.0
    %321 = vmatpush1.msra.mxu0 %v301
    %322 = vmatprep.subr.mxu0 0.0
    %323 = vmatpush1.msra.mxu0 %v302
    %324 = vmatprep.subr.mxu0 0.0
    %325 = vmatpush1.msra.mxu0 %v303
    %326 = vmatprep.subr.mxu0 0.0
    %327 = vmatpush1.msra.mxu0 %v304
    %328 = vmatprep.subr.mxu0 0.0
    %329 = vmatpush1.msra.mxu0 %v305
    %330 = vmatprep.subr.mxu0 0.0
    %331 = vmatpush1.msra.mxu0 %v306
    %332 = vmatprep.subr.mxu0 0.0
    %333 = vmatpush1.msra.mxu0 %v307
    %334 = vmatprep.subr.mxu0 0.0
    %335 = vmatpush1.msra.mxu0 %v308
    %336 = vmatprep.subr.mxu0 0.0
    %337 = vmatpush1.msra.mxu0 %v309
    %338 = vmatprep.subr.mxu0 0.0
    %339 = vmatpush1.msra.mxu0 %v310
    %340 = vmatprep.subr.mxu0 0.0
    %341 = vmatpush1.msra.mxu0 %v311
    %342 = vmatprep.subr.mxu0 0.0
    %343 = vmatpush1.msra.mxu0 %v312
    %344 = vmatprep.subr.mxu0 0.0
    %345 = vmatpush1.msra.mxu0 %v313
    %346 = vmatprep.subr.mxu0 0.0
    %347 = vmatpush1.msra.mxu0 0.0
    %348 = vmatprep.subr.mxu0 0.0
    %349 = vmatpush1.msra.mxu0 0.0
    %350 = vmatprep.subr.mxu0 0.0
    %351 = vmatpush1.msra.mxu0 0.0
    %352 = vmatprep.subr.mxu0 0.0
    %353 = vmatpush1.msra.mxu0 0.0
    %354 = vmatprep.subr.mxu0 0.0
    %355 = vmatpush1.msra.mxu0 0.0
    %356 = vmatprep.subr.mxu0 0.0
    %357 = vmatpush1.msra.mxu0 0.0
    %358 = vmatprep.subr.mxu0 0.0
    %359 = vmatpush1.msra.mxu0 0.0
    %360 = vmatprep.subr.mxu0 0.0
    %361 = vmatpush1.msra.mxu0 0.0
    %362 = vmatprep.subr.mxu0 0.0
    %363 = vmatpush1.msra.mxu0 0.0
    %364 = vmatprep.subr.mxu0 0.0
    %365 = vmatpush1.msra.mxu0 0.0
    %366 = vmatprep.subr.mxu0 0.0
    %367 = vmatpush1.msra.mxu0 0.0
    %368 = vmatprep.subr.mxu0 0.0
    %369 = vmatpush1.msra.mxu0 0.0
    %370 = vmatprep.subr.mxu0 0.0
    %371 = vmatpush1.msra.mxu0 0.0
    %372 = vmatprep.subr.mxu0 0.0
    %373 = vmatpush1.msra.mxu0 0.0
    %374 = vmatprep.subr.mxu0 0.0
    %375 = vmatpush1.msra.mxu0 0.0
    %376 = vmatprep.subr.mxu0 0.0
    %377 = vmatpush1.msra.mxu0 0.0
    %378 = vmatprep.mubr.f32.mxu0 0.0
    %379 = vmatmul.mubr.f32.gmra.mrb[0].mxu0 %v297
    %v380 = vpop.f32.mrb[0].mxu0
    %v381 = vadd.f32 0.0, %v380
    %v382 = vpop.f32.mrb[0].mxu0
    %383 = vdwg.mxu0
    %v384 = vlog2.pop %v381
    %v385 = vmul.f32 %v384, 0.6931472
    %v386 = vsub.f32 %v294, %v385
    %v387 = vsel %vm290, %v386, %v280
    %388 = vst [vmem:[#allocation10] sm:$0xff] %v387
    // Predicated region
    $region46: #{tpu_custom_call.1} parent=1 // pred_check
      _
    $region47: #{tpu_custom_call.1} parent=1 // pred_check_branch
      %390 = sbr.rel (0) target = $region49
    $region48: #{tpu_custom_call.1} parent=1 // pred_region
      %s392 = ssub.s32 128, 128
      %393 = vsyncadd [#allocation4], %s392
      %s395 = sshll.u32 [#allocation10], 4
      %s396 = int_to_ptr.vmem [resolvable:$true] %s395
      %398 = dma.vmem_to_hbm [thread:$0]  %s396, 128, %s7, [#allocation4]
    $region49: #{tpu_custom_call.1} parent=1 // pred_fallthru
      _
    // Predicated region
    $region50: #{tpu_custom_call.1} parent=1 // pred_check
      _
    $region51: #{tpu_custom_call.1} parent=1 // pred_check_branch
      %400 = sbr.rel (0) target = $region53
    $region52: #{tpu_custom_call.1} parent=1 // pred_region
      %401 = dma.done [#allocation4], 128
    $region53: #{tpu_custom_call.1} parent=1 // pred_fallthru
      _
    %402 = vsyncpa [#allocation3], 1
    %403 = vsyncpa [#allocation6], 1
    %404 = vsyncpa [#allocation9], 1
    %405 = vsyncpa [#allocation4], 1

</llo_original>
